<compile_context>
chip_gen: v7x
topology: tpu7x:2x2x1
jax: 0.10.0
libtpu: 0.0.40
codegen_flags: <defaults>
</compile_context>

<pallas_src>
import math
import functools

import numpy as np
import jax
import jax.numpy as jnp
from jax.experimental import pallas as pl
from jax.experimental.pallas import tpu as pltpu


def _round_up(x, m):
    return ((x + m - 1) // m) * m


@functools.lru_cache(maxsize=1)
def _tpu_defaults():
    """(vmem_limit_bytes, tile_q) tuned per TPU generation."""
    vmem_cap = 64 * 1024 * 1024                      # conservative fallback (v7x size)
    try:
        info = pltpu.get_tpu_info()
        vmem_cap = int(getattr(info, "vmem_capacity_bytes", vmem_cap))
    except Exception:
        pass
    # ~75% of capacity: ~96 MiB on v5e/v6e (128 MiB), ~48 MiB on v7x (64 MiB).
    vmem_limit = min(int(vmem_cap * 3 // 4), 112 * 1024 * 1024)

    tile_q = 256                                     # v6e/v7x MXUs are 2x256^2
    try:
        kind = jax.devices()[0].device_kind.lower()
    except Exception:
        kind = ""
    if "v5e" in kind or "v5 lite" in kind or "v5lite" in kind:
        tile_q = 128                                 # v5e MXU is 4x128^2; 128 is native
    return vmem_limit, tile_q


# ----------------------------------------------------------------------------
# PAM graph construction (pure Python/numpy port of get_q_k; glue, not kernel)
# ----------------------------------------------------------------------------
def get_q_k_np(input_size, window_size, stride):
    second_length = input_size // stride
    second_last = input_size - (second_length - 1) * stride
    third_start = input_size + second_length
    third_length = second_length // stride
    third_last = second_length - (third_length - 1) * stride
    max_attn = max(second_last, third_last)
    fourth_start = third_start + third_length
    fourth_length = third_length // stride
    full_length = fourth_start + fourth_length
    fourth_last = third_length - (fourth_length - 1) * stride
    max_attn = max(third_last, fourth_last)
    max_attn += window_size + 1

    mask = np.zeros((full_length, max_attn), dtype=np.int32) - 1

    for i in range(input_size):
        mask[i, 0:window_size] = i + np.arange(window_size) - window_size // 2
        mask[i, mask[i] > input_size - 1] = -1
        mask[i, -1] = i // stride + input_size
        mask[i][mask[i] > third_start - 1] = third_start - 1

    for i in range(second_length):
        r = input_size + i
        mask[r, 0:window_size] = input_size + i + np.arange(window_size) - window_size // 2
        mask[r, mask[r] < input_size] = -1
        mask[r, mask[r] > third_start - 1] = -1
        if i < second_length - 1:
            mask[r, window_size:window_size + stride] = np.arange(stride) + i * stride
        else:
            mask[r, window_size:window_size + second_last] = np.arange(second_last) + i * stride
        mask[r, -1] = i // stride + third_start
        mask[r, mask[r] > fourth_start - 1] = fourth_start - 1

    for i in range(third_length):
        r = third_start + i
        mask[r, 0:window_size] = third_start + i + np.arange(window_size) - window_size // 2
        mask[r, mask[r] < third_start] = -1
        mask[r, mask[r] > fourth_start - 1] = -1
        if i < third_length - 1:
            mask[r, window_size:window_size + stride] = input_size + np.arange(stride) + i * stride
        else:
            mask[r, window_size:window_size + third_last] = input_size + np.arange(third_last) + i * stride
        mask[r, -1] = i // stride + fourth_start
        mask[r, mask[r] > full_length - 1] = full_length - 1

    for i in range(fourth_length):
        r = fourth_start + i
        mask[r, 0:window_size] = fourth_start + i + np.arange(window_size) - window_size // 2
        mask[r, mask[r] < fourth_start] = -1
        mask[r, mask[r] > full_length - 1] = -1
        if i < fourth_length - 1:
            mask[r, window_size:window_size + stride] = third_start + np.arange(stride) + i * stride
        else:
            mask[r, window_size:window_size + fourth_last] = third_start + np.arange(fourth_last) + i * stride

    return mask


def plan_seq_padding(seq_len, tile_q):
    """Padded sequence length and query tile (32-aligned, Sp % TQ == 0)."""
    sp = _round_up(max(int(seq_len), 32), 32)
    tq = min(int(tile_q), sp)
    sp = _round_up(sp, tq)
    return sp, tq


def q_k_mask_to_adjacency(q_k_mask, s_pad):
    """Per-row neighbor index list -> dense (s_pad, s_pad) int8 adjacency (1=neighbor).

    Built ONCE per model config on the host; pass the result into the forward wrapper.
    """
    S, M = q_k_mask.shape
    adj = np.zeros((s_pad, s_pad), dtype=np.int8)
    rows = np.repeat(np.arange(S), M)
    cols = np.asarray(q_k_mask).reshape(-1).astype(np.int64)
    valid = cols >= 0
    adj[rows[valid], cols[valid]] = 1
    return adj


# ----------------------------------------------------------------------------
# In-kernel LayerNorm (two-pass variance) over a lane-padded feature axis.
#   x pad lanes are zero; gamma/beta are zero-padded, so output pad lanes stay 0.
# ----------------------------------------------------------------------------
def _layer_norm(x, gamma, beta, d_real, eps):
    x = x.astype(jnp.float32)
    inv_d = 1.0 / float(d_real)
    mean = jnp.sum(x, axis=-1, keepdims=True) * inv_d
    xc = x - mean
    if x.shape[-1] != d_real:
        lane = jax.lax.broadcasted_iota(jnp.int32, x.shape, x.ndim - 1)
        xc = jnp.where(lane < d_real, xc, 0.0)      # keep pad lanes exactly 0
    var = jnp.sum(xc * xc, axis=-1, keepdims=True) * inv_d
    return xc * jax.lax.rsqrt(var + eps) * gamma + beta


# ----------------------------------------------------------------------------
# Kernel A: fused (optional pre-LN) + Q/K/V projections.  Batch folded into M.
# ----------------------------------------------------------------------------
def _qkv_proj_kernel(h_ref, wq_ref, wk_ref, wv_ref, g_ref, bt_ref,
                     q_ref, k_ref, v_ref, *, d_real, eps, normalize_before):
    h = h_ref[...]                                   # (TM, Dp) compute dtype
    if normalize_before:
        q_in = _layer_norm(h, g_ref[0], bt_ref[0], d_real, eps).astype(wq_ref.dtype)
    else:
        q_in = h
    # W_q already carries the 1/sqrt(d_k) scale (folded on the host).
    q_ref[...] = jnp.dot(q_in, wq_ref[...],
                         preferred_element_type=jnp.float32).astype(q_ref.dtype)
    k_ref[...] = jnp.dot(h, wk_ref[...],
                         preferred_element_type=jnp.float32).astype(k_ref.dtype)
    v_ref[...] = jnp.dot(h, wv_ref[...],
                         preferred_element_type=jnp.float32).astype(v_ref.dtype)


# ----------------------------------------------------------------------------
# Kernel B: masked graph attention + output projection + residual + (post) LN.
#   grid = (batch, query_tile); heads are an in-kernel (unrolled) loop.
# ----------------------------------------------------------------------------
def _graph_attn_kernel(q_ref, k_ref, v_ref, adj_ref, wfc_ref, bfc_ref, g_ref, bt_ref,
                       res_ref, out_ref,
                       *, n_head, d_k, d_real, eps, normalize_before):
    q = q_ref[0]                                     # (TQ, HD)
    k = k_ref[0]                                     # (Sp, HD)  fetched once per batch elem
    v = v_ref[0]                                     # (Sp, HD)
    wfc = wfc_ref[...]                               # (HD, Dp)  fetched once per kernel
    neigh = adj_ref[...] > 0                         # (TQ, Sp)  computed once per (b, t)

    acc = jnp.zeros((q.shape[0], wfc.shape[1]), jnp.float32)
    for h in range(n_head):                          # short fixed trip count -> unrolled
        lo = h * d_k
        qh = q[:, lo:lo + d_k]
        kh = k[:, lo:lo + d_k]
        vh = v[:, lo:lo + d_k]
        # scores: (TQ, d_k) x (Sp, d_k)^T -> (TQ, Sp), f32 accumulation on the MXU
        s = jax.lax.dot_general(qh, kh, (((1,), (1,)), ((), ())),
                                preferred_element_type=jnp.float32)
        s = jnp.where(neigh, s, -1e9)                # graph_mm padding = -1e9
        m = jnp.max(s, axis=-1, keepdims=True)
        e = jnp.exp(s - m)
        denom = jnp.sum(e, axis=-1, keepdims=True)
        p = e * pl.reciprocal(denom, approx=True)    # EUP reciprocal (free slot)
        o = jnp.dot(p.astype(vh.dtype), vh,
                    preferred_element_type=jnp.float32)          # (TQ, d_k)
        # Fold the output projection into the head reduction (no concat).
        acc = acc + jnp.dot(o.astype(wfc.dtype), wfc[lo:lo + d_k, :],
                            preferred_element_type=jnp.float32)  # (TQ, Dp)

    ctx = acc + bfc_ref[0] + res_ref[0].astype(jnp.float32)
    if not normalize_before:
        ctx = _layer_norm(ctx, g_ref[0], bt_ref[0], d_real, eps)
    out_ref[0] = ctx.astype(out_ref.dtype)


# ----------------------------------------------------------------------------
# Wrapper: pad/re-layout params, build the two pallas_calls.
#   Projection weights are pre-transposed: wq/wk/wv (D, H*d_k), wfc (H*d_k, D).
#   `adj` is the precomputed (Sp, Sp) int8 adjacency (see q_k_mask_to_adjacency).
# ----------------------------------------------------------------------------
def graph_self_attention(hidden, wq, wk, wv, wfc, bfc, gamma, beta, adj,
                         *, n_head, d_k, normalize_before=False, eps=1e-6,
                         compute_dtype=jnp.bfloat16, tile_q=None):
    B, S, D = hidden.shape
    HD = n_head * d_k
    f32 = jnp.float32

    vmem_limit, default_tq = _tpu_defaults()
    if tile_q is None:
        tile_q = default_tq

    Sp = adj.shape[0]
    assert adj.shape == (Sp, Sp) and Sp >= S
    TQ = min(int(tile_q), Sp)
    assert TQ % 32 == 0 and Sp % TQ == 0, "use plan_seq_padding() for Sp / tile_q"
    n_qt = Sp // TQ

    Dp = _round_up(D, 128)
    TM = TQ
    BM = B * Sp
    n_mt = BM // TM

    # --- host-side parameter re-layout / padding ---
    def pad_in_proj(w, scale=1.0):
        w = jnp.asarray(w, f32) * scale                         # (D, HD)
        return jnp.pad(w, ((0, Dp - D), (0, 0))).astype(compute_dtype)

    wq_p = pad_in_proj(wq, 1.0 / math.sqrt(d_k))                # fold 1/sqrt(d_k) into W_q
    wk_p = pad_in_proj(wk)
    wv_p = pad_in_proj(wv)
    wfc_p = jnp.pad(jnp.asarray(wfc, f32),
                    ((0, 0), (0, Dp - D))).astype(compute_dtype)          # (HD, Dp)

    bfc_p = jnp.pad(jnp.asarray(bfc, f32).reshape(1, D), ((0, 0), (0, Dp - D)))
    gamma_p = jnp.pad(jnp.asarray(gamma, f32).reshape(1, D), ((0, 0), (0, Dp - D)))
    beta_p = jnp.pad(jnp.asarray(beta, f32).reshape(1, D), ((0, 0), (0, Dp - D)))

    hid_res = jnp.pad(jnp.asarray(hidden, f32),
                      ((0, 0), (0, Sp - S), (0, Dp - D)))                 # f32 residual
    hid2d = hid_res.astype(compute_dtype).reshape(BM, Dp)                 # kernel A input

    def _const_spec(shape):
        """BlockSpec for a constant-index (weight/param) block; single-buffered."""
        idx = lambda *_: (0,) * len(shape)
        try:
            return pl.BlockSpec(shape, idx, pipeline_mode=pl.Buffered(1))
        except TypeError:   # older jax without pipeline_mode kwarg
            return pl.BlockSpec(shape, idx)

    # --- Kernel A: Q/K/V projections (batch folded into M) ---
    proj = pl.pallas_call(
        functools.partial(_qkv_proj_kernel, d_real=D, eps=eps,
                          normalize_before=normalize_before),
        out_shape=(jax.ShapeDtypeStruct((BM, HD), compute_dtype),) * 3,
        grid=(n_mt,),
        in_specs=[
            pl.BlockSpec((TM, Dp), lambda m: (m, 0)),      # hidden (flattened)
            _const_spec((Dp, HD)),                         # W_q (pre-scaled)
            _const_spec((Dp, HD)),                         # W_k
            _const_spec((Dp, HD)),                         # W_v
            _const_spec((1, Dp)),                          # LN gamma
            _const_spec((1, Dp)),                          # LN beta
        ],
        out_specs=(pl.BlockSpec((TM, HD), lambda m: (m, 0)),) * 3,
        compiler_params=pltpu.CompilerParams(
            dimension_semantics=("parallel",),
            vmem_limit_bytes=vmem_limit),
    )
    q2, k2, v2 = proj(hid2d, wq_p, wk_p, wv_p, gamma_p, beta_p)
    q3 = q2.reshape(B, Sp, HD)
    k3 = k2.reshape(B, Sp, HD)
    v3 = v2.reshape(B, Sp, HD)

    # --- Kernel B: masked graph attention + fc + residual + LN ---
    # NOTE(v7x): keep B * n_qt >= 2 so both TensorCores get parallel grid work.
    attn = pl.pallas_call(
        functools.partial(_graph_attn_kernel, n_head=n_head, d_k=d_k, d_real=D,
                          eps=eps, normalize_before=normalize_before),
        out_shape=jax.ShapeDtypeStruct((B, Sp, Dp), jnp.float32),
        grid=(B, n_qt),
        in_specs=[
            pl.BlockSpec((1, TQ, HD), lambda b, t: (b, t, 0)),   # q (all heads)
            pl.BlockSpec((1, Sp, HD), lambda b, t: (b, 0, 0)),   # k (fetched once per b)
            pl.BlockSpec((1, Sp, HD), lambda b, t: (b, 0, 0)),   # v (fetched once per b)
            pl.BlockSpec((TQ, Sp), lambda b, t: (t, 0)),         # int8 adjacency
            _const_spec((HD, Dp)),                               # W_fc (all heads)
            _const_spec((1, Dp)),                                # fc bias
            _const_spec((1, Dp)),                                # LN gamma
            _const_spec((1, Dp)),                                # LN beta
            pl.BlockSpec((1, TQ, Dp), lambda b, t: (b, t, 0)),   # residual (f32)
        ],
        out_specs=pl.BlockSpec((1, TQ, Dp), lambda b, t: (b, t, 0)),
        compiler_params=pltpu.CompilerParams(
            dimension_semantics=("parallel", "parallel"),
            vmem_limit_bytes=vmem_limit),
    )
    out_p = attn(q3, k3, v3, adj, wfc_p, bfc_p, gamma_p, beta_p, hid_res)

    return out_p[:, :S, :D]


# ----------------------------------------------------------------------------
# Pure-JAX reference implementing the true sparse gather semantics of graph_mm_tvm
# ----------------------------------------------------------------------------
def reference_forward(hidden, wq, wk, wv, wfc, bfc, gamma, beta, q_k_mask,
                      *, n_head, d_k, normalize_before=False, eps=1e-6):
    bsz, S, D = hidden.shape
    residual = hidden
    q_in = hidden
    if normalize_before:
        mu = jnp.mean(q_in, axis=-1, keepdims=True)
        var = jnp.mean((q_in - mu) ** 2, axis=-1, keepdims=True)
        q_in = (q_in - mu) * jax.lax.rsqrt(var + eps) * gamma[0] + beta[0]
    q = jnp.dot(q_in, wq) / math.sqrt(d_k)
    k = jnp.dot(hidden, wk)
    v = jnp.dot(hidden, wv)
    q = q.reshape(bsz, S, n_head, d_k)
    k = k.reshape(bsz, S, n_head, d_k)
    v = v.reshape(bsz, S, n_head, d_k)

    mask = jnp.asarray(q_k_mask)                     # (S, M)
    idx = jnp.clip(mask, 0, S - 1)
    k_g = k[:, idx]                                  # (b, S, M, H, d_k)
    v_g = v[:, idx]
    scores = jnp.einsum('bshd,bsmhd->bshm', q, k_g)
    valid = (mask >= 0)[None, :, None, :]
    scores = jnp.where(valid, scores, -1e9)          # graph_mm padding = -1e9
    p = jax.nn.softmax(scores, axis=-1)
    attn = jnp.einsum('bshm,bsmhd->bshd', p, v_g)
    attn = attn.reshape(bsz, S, n_head * d_k)
    ctx = jnp.dot(attn, wfc) + bfc[0]
    ctx = ctx + residual
    if not normalize_before:
        mu = jnp.mean(ctx, axis=-1, keepdims=True)
        var = jnp.mean((ctx - mu) ** 2, axis=-1, keepdims=True)
        ctx = (ctx - mu) * jax.lax.rsqrt(var + eps) * gamma[0] + beta[0]
    return ctx


def xavier_uniform(key, shape):
    fan_in, fan_out = shape[0], shape[1]
    bound = math.sqrt(6.0 / (fan_in + fan_out))
    return jax.random.uniform(key, shape, jnp.float32, -bound, bound)


if __name__ == "__main__":
    # Pyraformer pyramid config (small): input_size=16, window=3, stride=2
    input_size, window_size, stride = 16, 3, 2
    d_model, n_head, d_k = 16, 2, 8
    bsz = 2
    eps = 1e-6   # matches nn.LayerNorm(d_model, eps=1e-06)

    q_k_mask = get_q_k_np(input_size, window_size, stride)   # (full_length, max_attn)
    full_length = q_k_mask.shape[0]                          # = 30 for this config

    # Adjacency is built once per model config on the host (hoisted out of forward).
    _, tile_q = _tpu_defaults()
    Sp, TQ = plan_seq_padding(full_length, tile_q)
    adj = jnp.asarray(q_k_mask_to_adjacency(q_k_mask, Sp))   # (Sp, Sp) int8

    key = jax.random.PRNGKey(0)
    k_h, k_q, k_k, k_v, k_fc, k_bfc = jax.random.split(key, 6)

    HD = n_head * d_k
    wq = xavier_uniform(k_q, (d_model, HD))
    wk = xavier_uniform(k_k, (d_model, HD))
    wv = xavier_uniform(k_v, (d_model, HD))
    wfc = xavier_uniform(k_fc, (HD, d_model))
    b_bound = 1.0 / math.sqrt(HD)
    bfc = jax.random.uniform(k_bfc, (1, d_model), jnp.float32, -b_bound, b_bound)
    gamma = jnp.ones((1, d_model), jnp.float32)
    beta = jnp.zeros((1, d_model), jnp.float32)

    hidden = jax.random.normal(k_h, (bsz, full_length, d_model), jnp.float32)

    for normalize_before in (False, True):
        out = graph_self_attention(hidden, wq, wk, wv, wfc, bfc, gamma, beta, adj,
                                   n_head=n_head, d_k=d_k, tile_q=TQ,
                                   normalize_before=normalize_before, eps=eps)
        out = jax.block_until_ready(out)

        ref = reference_forward(hidden, wq, wk, wv, wfc, bfc, gamma, beta, q_k_mask,
                                n_head=n_head, d_k=d_k,
                                normalize_before=normalize_before, eps=eps)
        ref = jax.block_until_ready(ref)

        # bf16 matmul operands (f32 accumulation) -> loose-but-meaningful tolerance.
        np.testing.assert_allclose(np.asarray(out), np.asarray(ref), rtol=5e-2, atol=5e-2)

    print("KERNEL_OK")
</pallas_src>

<mosaic_0001>
module attributes {stable_mosaic.version = 11 : i64} {
  func.func @_qkv_proj_kernel(%arg0: i32, %arg1: memref<32x128xbf16, #tpu.memory_space<vmem>>, %arg2: memref<128x16xbf16, #tpu.memory_space<vmem>>, %arg3: memref<128x16xbf16, #tpu.memory_space<vmem>>, %arg4: memref<128x16xbf16, #tpu.memory_space<vmem>>, %arg5: memref<1x128xf32, #tpu.memory_space<vmem>>, %arg6: memref<1x128xf32, #tpu.memory_space<vmem>>, %arg7: memref<32x16xbf16, #tpu.memory_space<vmem>>, %arg8: memref<32x16xbf16, #tpu.memory_space<vmem>>, %arg9: memref<32x16xbf16, #tpu.memory_space<vmem>>) attributes {dimension_semantics = [#tpu.dimension_semantics<parallel>], iteration_bounds = array<i64: 2>, scalar_prefetch = 0 : i64, scratch_operands = 0 : i64, tpu.core_type = #tpu.core_type<tc>, window_params = [{transform_indices = @transform_0, window_bounds = array<i64: 32, 128>}, {pipeline_mode = #tpu.pipeline_mode<synchronous>, transform_indices = @transform_1, window_bounds = array<i64: 128, 16>}, {pipeline_mode = #tpu.pipeline_mode<synchronous>, transform_indices = @transform_2, window_bounds = array<i64: 128, 16>}, {pipeline_mode = #tpu.pipeline_mode<synchronous>, transform_indices = @transform_3, window_bounds = array<i64: 128, 16>}, {pipeline_mode = #tpu.pipeline_mode<synchronous>, transform_indices = @transform_4, window_bounds = array<i64: 1, 128>}, {pipeline_mode = #tpu.pipeline_mode<synchronous>, transform_indices = @transform_5, window_bounds = array<i64: 1, 128>}, {transform_indices = @transform_6, window_bounds = array<i64: 32, 16>}, {transform_indices = @transform_7, window_bounds = array<i64: 32, 16>}, {transform_indices = @transform_8, window_bounds = array<i64: 32, 16>}]} {
    %c0 = arith.constant 0 : index
    %c0_0 = arith.constant 0 : index
    %0 = vector.load %arg1[%c0, %c0_0] : memref<32x128xbf16, #tpu.memory_space<vmem>>, vector<32x128xbf16>
    %c0_1 = arith.constant 0 : index
    %c0_2 = arith.constant 0 : index
    %1 = vector.load %arg2[%c0_1, %c0_2] : memref<128x16xbf16, #tpu.memory_space<vmem>>, vector<128x16xbf16>
    %cst = arith.constant dense<0.000000e+00> : vector<32x16xf32>
    %2 = tpu.matmul %0, %1, %cst {dimension_numbers = #tpu.dot_dimension_numbers<[1], [0], [0], [1], [0, 0, 1, 1], [], []>} : vector<32x128xbf16>, vector<128x16xbf16>, vector<32x16xf32> -> vector<32x16xf32>
    %3 = arith.truncf %2 : vector<32x16xf32> to vector<32x16xbf16>
    %c0_3 = arith.constant 0 : index
    %c0_4 = arith.constant 0 : index
    %4 = vector.load %arg7[%c0_3, %c0_4] : memref<32x16xbf16, #tpu.memory_space<vmem>>, vector<32x16xbf16>
    tpu.vector_store %arg7[%c0_3, %c0_4], %3 {strides = array<i32>} : memref<32x16xbf16, #tpu.memory_space<vmem>>, vector<32x16xbf16>,
    %c0_5 = arith.constant 0 : index
    %c0_6 = arith.constant 0 : index
    %5 = vector.load %arg3[%c0_5, %c0_6] : memref<128x16xbf16, #tpu.memory_space<vmem>>, vector<128x16xbf16>
    %cst_7 = arith.constant dense<0.000000e+00> : vector<32x16xf32>
    %6 = tpu.matmul %0, %5, %cst_7 {dimension_numbers = #tpu.dot_dimension_numbers<[1], [0], [0], [1], [0, 0, 1, 1], [], []>} : vector<32x128xbf16>, vector<128x16xbf16>, vector<32x16xf32> -> vector<32x16xf32>
    %7 = arith.truncf %6 : vector<32x16xf32> to vector<32x16xbf16>
    %c0_8 = arith.constant 0 : index
    %c0_9 = arith.constant 0 : index
    %8 = vector.load %arg8[%c0_8, %c0_9] : memref<32x16xbf16, #tpu.memory_space<vmem>>, vector<32x16xbf16>
    tpu.vector_store %arg8[%c0_8, %c0_9], %7 {strides = array<i32>} : memref<32x16xbf16, #tpu.memory_space<vmem>>, vector<32x16xbf16>,
    %c0_10 = arith.constant 0 : index
    %c0_11 = arith.constant 0 : index
    %9 = vector.load %arg4[%c0_10, %c0_11] : memref<128x16xbf16, #tpu.memory_space<vmem>>, vector<128x16xbf16>
    %cst_12 = arith.constant dense<0.000000e+00> : vector<32x16xf32>
    %10 = tpu.matmul %0, %9, %cst_12 {dimension_numbers = #tpu.dot_dimension_numbers<[1], [0], [0], [1], [0, 0, 1, 1], [], []>} : vector<32x128xbf16>, vector<128x16xbf16>, vector<32x16xf32> -> vector<32x16xf32>
    %11 = arith.truncf %10 : vector<32x16xf32> to vector<32x16xbf16>
    %c0_13 = arith.constant 0 : index
    %c0_14 = arith.constant 0 : index
    %12 = vector.load %arg9[%c0_13, %c0_14] : memref<32x16xbf16, #tpu.memory_space<vmem>>, vector<32x16xbf16>
    tpu.vector_store %arg9[%c0_13, %c0_14], %11 {strides = array<i32>} : memref<32x16xbf16, #tpu.memory_space<vmem>>, vector<32x16xbf16>,
    return
  }
  func.func @transform_0(%arg0: i32) -> (i32, i32) {
    %c0_i32 = arith.constant 0 : i32
    %c0_i32_0 = arith.constant 0 : i32
    return %arg0, %c0_i32 : i32, i32
  }
  func.func @transform_1(%arg0: i32) -> (i32, i32) {
    %c0_i32 = arith.constant 0 : i32
    %c0_i32_0 = arith.constant 0 : i32
    %c0_i32_1 = arith.constant 0 : i32
    return %c0_i32, %c0_i32_0 : i32, i32
  }
  func.func @transform_2(%arg0: i32) -> (i32, i32) {
    %c0_i32 = arith.constant 0 : i32
    %c0_i32_0 = arith.constant 0 : i32
    %c0_i32_1 = arith.constant 0 : i32
    return %c0_i32, %c0_i32_0 : i32, i32
  }
  func.func @transform_3(%arg0: i32) -> (i32, i32) {
    %c0_i32 = arith.constant 0 : i32
    %c0_i32_0 = arith.constant 0 : i32
    %c0_i32_1 = arith.constant 0 : i32
    return %c0_i32, %c0_i32_0 : i32, i32
  }
  func.func @transform_4(%arg0: i32) -> (i32, i32) {
    %c0_i32 = arith.constant 0 : i32
    %c0_i32_0 = arith.constant 0 : i32
    %c0_i32_1 = arith.constant 0 : i32
    return %c0_i32, %c0_i32_0 : i32, i32
  }
  func.func @transform_5(%arg0: i32) -> (i32, i32) {
    %c0_i32 = arith.constant 0 : i32
    %c0_i32_0 = arith.constant 0 : i32
    %c0_i32_1 = arith.constant 0 : i32
    return %c0_i32, %c0_i32_0 : i32, i32
  }
  func.func @transform_6(%arg0: i32) -> (i32, i32) {
    %c0_i32 = arith.constant 0 : i32
    %c0_i32_0 = arith.constant 0 : i32
    return %arg0, %c0_i32 : i32, i32
  }
  func.func @transform_7(%arg0: i32) -> (i32, i32) {
    %c0_i32 = arith.constant 0 : i32
    %c0_i32_0 = arith.constant 0 : i32
    return %arg0, %c0_i32 : i32, i32
  }
  func.func @transform_8(%arg0: i32) -> (i32, i32) {
    %c0_i32 = arith.constant 0 : i32
    %c0_i32_0 = arith.constant 0 : i32
    return %arg0, %c0_i32 : i32, i32
  }
}

</mosaic_0001>

<llo_original>
// kernel: tpu_custom_call.1
$region0: #{tpu_custom_call.1}
  #allocation0 [shape = 'u32[]', space=smem, size = 0x4, offset = 0x4, fixed_abs, tag = 'smem constant byte address 0x4 - core index']
  #allocation1 [shape = 'u32[144,128]{1,0:T(1,128)}', space=vmem, size = 0x12000, scoped, tag = 'internal scratch']
  %s0 = inlined_call_operand.vmem [shape: bf16[64,128], index: 0, kind: input, shape index: {}]
  %s1 = inlined_call_operand.vmem [shape: bf16[128,16], index: 1, kind: input, shape index: {}]
  %s2 = inlined_call_operand.vmem [shape: bf16[128,16], index: 2, kind: input, shape index: {}]
  %s3 = inlined_call_operand.vmem [shape: bf16[128,16], index: 3, kind: input, shape index: {}]
  %s4 = inlined_call_operand.vmem [shape: f32[1,128], index: 4, kind: input, shape index: {}]
  %s5 = inlined_call_operand.vmem [shape: f32[1,128], index: 5, kind: input, shape index: {}]
  %s6 = inlined_call_operand.vmem [shape: bf16[64,16], index: 6, kind: output, shape index: {0}]
  %s7 = inlined_call_operand.vmem [shape: bf16[64,16], index: 7, kind: output, shape index: {1}]
  %s8 = inlined_call_operand.vmem [shape: bf16[64,16], index: 8, kind: output, shape index: {2}]
  %9 = xla_tuple %s6, %s7, %s8
  %s10 = sld [smem:[#allocation0]]
  $region73: #{tpu_custom_call.1} parent=0
    _
  %s12 = ssub.s32 1, %s10
  %s13 = scalar_select 0, %s12, %s10
  loop: start=0, step=1, limit=4
  $region2: #{tpu_custom_call.1} parent=0 // loop_pre_header
    _
  $region3: #{tpu_custom_call.1} parent=0 // loop_header
    %s15 = sphi 0, %s19
    %p16 = scmp.ge.s32.totalorder %s15, 4
    %s25 = sphi 0, %s27
    %s28 = sphi 0, %s25
    %s29 = sphi 0, %s28
    %s45 = sphi 0, %s29
    %s49 = sphi 0, %s49
    %s51 = sphi 0, %s49
    %s52 = sphi 0, %s51
    %s66 = sphi 0, %s52
    %s70 = sphi 0, %s70
    %s72 = sphi 0, %s70
    %s73 = sphi 0, %s72
    %s87 = sphi 0, %s73
    %s91 = sphi 0, %s91
    %s93 = sphi 0, %s91
    %s94 = sphi 0, %s93
    %s108 = sphi 0, %s94
    %s112 = sphi 0, %s112
    %s114 = sphi 0, %s112
    %s115 = sphi 0, %s114
    %s129 = sphi 0, %s115
    %s133 = sphi 0, %s133
    %s135 = sphi 0, %s133
    %s136 = sphi 0, %s135
    %s150 = sphi 0, %s136
    %s156 = sphi 0, %s158
    %s159 = sphi 0, %s156
    %s160 = sphi 0, %s159
    %s176 = sphi 0, %s160
    %s182 = sphi 0, %s184
    %s185 = sphi 0, %s182
    %s186 = sphi 0, %s185
    %s202 = sphi 0, %s186
    %s208 = sphi 0, %s210
    %s211 = sphi 0, %s208
    %s212 = sphi 0, %s211
    %s228 = sphi 0, %s212
  $region4: #{tpu_custom_call.1} parent=0 // loop_header_branch
    %18 = sbr.rel (%p16) target = $region8
  $region5: #{tpu_custom_call.1} parent=0 // loop_body
    %s20 = ssub.s32 %s15, 1
    %s21 = ssub.s32 %s15, 2
    %s22 = sadd.s32 %s15, 1
    %s23 = ssub.s32 %s15, %s22
    %p24 = scmp.eq.s32.totalorder %s23, 0
    %s26 = sadd.s32 %s25, 1
    %s27 = scalar_select %p24, %s25, %s26
    %p30 = pneg %p24
    %p31 = scmp.eq.s32.totalorder %s15, 1
    %p32 = por %p30, %p31
    %p33 = scmp.ne.s32.totalorder %s25, %s28
    %p34 = scmp.eq.s32.totalorder %s15, 0
    %p35 = por %p33, %p34
    %p36 = scmp.ne.s32.totalorder %s25, %s28
    %p37 = scmp.eq.s32.totalorder %s20, 1
    %p38 = por %p36, %p37
    %p39 = scmp.ne.s32.totalorder %s28, %s29
    %p40 = scmp.eq.s32.totalorder %s20, 0
    %p41 = por %p39, %p40
    %p42 = scmp.ne.s32.totalorder %s28, %s29
    %p43 = scmp.eq.s32.totalorder %s21, 1
    %p44 = por %p42, %p43
    %p46 = scmp.ne.s32.totalorder %s29, %s45
    %p47 = scmp.eq.s32.totalorder %s21, 0
    %p48 = por %p46, %p47
    %s50 = sadd.s32 %s49, 1
    %p53 = scmp.eq.s32.totalorder %s15, 1
    %p54 = scmp.ne.s32.totalorder %s49, %s51
    %p55 = scmp.eq.s32.totalorder %s15, 0
    %p56 = por %p54, %p55
    %p57 = scmp.ne.s32.totalorder %s49, %s51
    %p58 = scmp.eq.s32.totalorder %s20, 1
    %p59 = por %p57, %p58
    %p60 = scmp.ne.s32.totalorder %s51, %s52
    %p61 = scmp.eq.s32.totalorder %s20, 0
    %p62 = por %p60, %p61
    %p63 = scmp.ne.s32.totalorder %s51, %s52
    %p64 = scmp.eq.s32.totalorder %s21, 1
    %p65 = por %p63, %p64
    %p67 = scmp.ne.s32.totalorder %s52, %s66
    %p68 = scmp.eq.s32.totalorder %s21, 0
    %p69 = por %p67, %p68
    %s71 = sadd.s32 %s70, 1
    %p74 = scmp.eq.s32.totalorder %s15, 1
    %p75 = scmp.ne.s32.totalorder %s70, %s72
    %p76 = scmp.eq.s32.totalorder %s15, 0
    %p77 = por %p75, %p76
    %p78 = scmp.ne.s32.totalorder %s70, %s72
    %p79 = scmp.eq.s32.totalorder %s20, 1
    %p80 = por %p78, %p79
    %p81 = scmp.ne.s32.totalorder %s72, %s73
    %p82 = scmp.eq.s32.totalorder %s20, 0
    %p83 = por %p81, %p82
    %p84 = scmp.ne.s32.totalorder %s72, %s73
    %p85 = scmp.eq.s32.totalorder %s21, 1
    %p86 = por %p84, %p85
    %p88 = scmp.ne.s32.totalorder %s73, %s87
    %p89 = scmp.eq.s32.totalorder %s21, 0
    %p90 = por %p88, %p89
    %s92 = sadd.s32 %s91, 1
    %p95 = scmp.eq.s32.totalorder %s15, 1
    %p96 = scmp.ne.s32.totalorder %s91, %s93
    %p97 = scmp.eq.s32.totalorder %s15, 0
    %p98 = por %p96, %p97
    %p99 = scmp.ne.s32.totalorder %s91, %s93
    %p100 = scmp.eq.s32.totalorder %s20, 1
    %p101 = por %p99, %p100
    %p102 = scmp.ne.s32.totalorder %s93, %s94
    %p103 = scmp.eq.s32.totalorder %s20, 0
    %p104 = por %p102, %p103
    %p105 = scmp.ne.s32.totalorder %s93, %s94
    %p106 = scmp.eq.s32.totalorder %s21, 1
    %p107 = por %p105, %p106
    %p109 = scmp.ne.s32.totalorder %s94, %s108
    %p110 = scmp.eq.s32.totalorder %s21, 0
    %p111 = por %p109, %p110
    %s113 = sadd.s32 %s112, 1
    %p116 = scmp.eq.s32.totalorder %s15, 1
    %p117 = scmp.ne.s32.totalorder %s112, %s114
    %p118 = scmp.eq.s32.totalorder %s15, 0
    %p119 = por %p117, %p118
    %p120 = scmp.ne.s32.totalorder %s112, %s114
    %p121 = scmp.eq.s32.totalorder %s20, 1
    %p122 = por %p120, %p121
    %p123 = scmp.ne.s32.totalorder %s114, %s115
    %p124 = scmp.eq.s32.totalorder %s20, 0
    %p125 = por %p123, %p124
    %p126 = scmp.ne.s32.totalorder %s114, %s115
    %p127 = scmp.eq.s32.totalorder %s21, 1
    %p128 = por %p126, %p127
    %p130 = scmp.ne.s32.totalorder %s115, %s129
    %p131 = scmp.eq.s32.totalorder %s21, 0
    %p132 = por %p130, %p131
    %s134 = sadd.s32 %s133, 1
    %p137 = scmp.eq.s32.totalorder %s15, 1
    %p138 = scmp.ne.s32.totalorder %s133, %s135
    %p139 = scmp.eq.s32.totalorder %s15, 0
    %p140 = por %p138, %p139
    %p141 = scmp.ne.s32.totalorder %s133, %s135
    %p142 = scmp.eq.s32.totalorder %s20, 1
    %p143 = por %p141, %p142
    %p144 = scmp.ne.s32.totalorder %s135, %s136
    %p145 = scmp.eq.s32.totalorder %s20, 0
    %p146 = por %p144, %p145
    %p147 = scmp.ne.s32.totalorder %s135, %s136
    %p148 = scmp.eq.s32.totalorder %s21, 1
    %p149 = por %p147, %p148
    %p151 = scmp.ne.s32.totalorder %s136, %s150
    %p152 = scmp.eq.s32.totalorder %s21, 0
    %p153 = por %p151, %p152
    %s154 = ssub.s32 %s15, %s22
    %p155 = scmp.eq.s32.totalorder %s154, 0
    %s157 = sadd.s32 %s156, 1
    %s158 = scalar_select %p155, %s156, %s157
    %p161 = pneg %p155
    %p162 = scmp.eq.s32.totalorder %s15, 1
    %p163 = por %p161, %p162
    %p164 = scmp.ne.s32.totalorder %s156, %s159
    %p165 = scmp.eq.s32.totalorder %s15, 0
    %p166 = por %p164, %p165
    %p167 = scmp.ne.s32.totalorder %s156, %s159
    %p168 = scmp.eq.s32.totalorder %s20, 1
    %p169 = por %p167, %p168
    %p170 = scmp.ne.s32.totalorder %s159, %s160
    %p171 = scmp.eq.s32.totalorder %s20, 0
    %p172 = por %p170, %p171
    %p173 = scmp.ne.s32.totalorder %s159, %s160
    %p174 = scmp.eq.s32.totalorder %s21, 1
    %p175 = por %p173, %p174
    %p177 = scmp.ne.s32.totalorder %s160, %s176
    %p178 = scmp.eq.s32.totalorder %s21, 0
    %p179 = por %p177, %p178
    %s180 = ssub.s32 %s15, %s22
    %p181 = scmp.eq.s32.totalorder %s180, 0
    %s183 = sadd.s32 %s182, 1
    %s184 = scalar_select %p181, %s182, %s183
    %p187 = pneg %p181
    %p188 = scmp.eq.s32.totalorder %s15, 1
    %p189 = por %p187, %p188
    %p190 = scmp.ne.s32.totalorder %s182, %s185
    %p191 = scmp.eq.s32.totalorder %s15, 0
    %p192 = por %p190, %p191
    %p193 = scmp.ne.s32.totalorder %s182, %s185
    %p194 = scmp.eq.s32.totalorder %s20, 1
    %p195 = por %p193, %p194
    %p196 = scmp.ne.s32.totalorder %s185, %s186
    %p197 = scmp.eq.s32.totalorder %s20, 0
    %p198 = por %p196, %p197
    %p199 = scmp.ne.s32.totalorder %s185, %s186
    %p200 = scmp.eq.s32.totalorder %s21, 1
    %p201 = por %p199, %p200
    %p203 = scmp.ne.s32.totalorder %s186, %s202
    %p204 = scmp.eq.s32.totalorder %s21, 0
    %p205 = por %p203, %p204
    %s206 = ssub.s32 %s15, %s22
    %p207 = scmp.eq.s32.totalorder %s206, 0
    %s209 = sadd.s32 %s208, 1
    %s210 = scalar_select %p207, %s208, %s209
    %p213 = pneg %p207
    %p214 = scmp.eq.s32.totalorder %s15, 1
    %p215 = por %p213, %p214
    %p216 = scmp.ne.s32.totalorder %s208, %s211
    %p217 = scmp.eq.s32.totalorder %s15, 0
    %p218 = por %p216, %p217
    %p219 = scmp.ne.s32.totalorder %s208, %s211
    %p220 = scmp.eq.s32.totalorder %s20, 1
    %p221 = por %p219, %p220
    %p222 = scmp.ne.s32.totalorder %s211, %s212
    %p223 = scmp.eq.s32.totalorder %s20, 0
    %p224 = por %p222, %p223
    %p225 = scmp.ne.s32.totalorder %s211, %s212
    %p226 = scmp.eq.s32.totalorder %s21, 1
    %p227 = por %p225, %p226
    %p229 = scmp.ne.s32.totalorder %s212, %s228
    %p230 = scmp.eq.s32.totalorder %s21, 0
    %p231 = por %p229, %p230
    %p232 = scmp.le.s32.totalorder 1, %s15
    %p233 = scmp.lt.s32.totalorder %s15, 3
    %p234 = pnand %p232, %p233
    %p235 = pneg %p234
    // Predicated region
    $region9: #{tpu_custom_call.1} parent=5 // pred_check
      _
    $region10: #{tpu_custom_call.1} parent=5 // pred_check_branch
      %237 = sbr.rel (%p234) target = $region12
    $region11: #{tpu_custom_call.1} parent=5 // pred_region
      %s238 = ssub.s32 %s15, 1
      // Predicated region
      $region13: #{tpu_custom_call.1} parent=11 // pred_check
        %p239 = pneg %p62
      $region14: #{tpu_custom_call.1} parent=11 // pred_check_branch
        %241 = sbr.rel (%p239) target = $region16
      $region15: #{tpu_custom_call.1} parent=11 // pred_region
        _
      $region16: #{tpu_custom_call.1} parent=11 // pred_fallthru
        _
      // Predicated region
      $region17: #{tpu_custom_call.1} parent=11 // pred_check
        %p242 = pneg %p83
      $region18: #{tpu_custom_call.1} parent=11 // pred_check_branch
        %244 = sbr.rel (%p242) target = $region20
      $region19: #{tpu_custom_call.1} parent=11 // pred_region
        _
      $region20: #{tpu_custom_call.1} parent=11 // pred_fallthru
        _
      // Predicated region
      $region21: #{tpu_custom_call.1} parent=11 // pred_check
        %p245 = pneg %p104
      $region22: #{tpu_custom_call.1} parent=11 // pred_check_branch
        %247 = sbr.rel (%p245) target = $region24
      $region23: #{tpu_custom_call.1} parent=11 // pred_region
        _
      $region24: #{tpu_custom_call.1} parent=11 // pred_fallthru
        _
      // Predicated region
      $region25: #{tpu_custom_call.1} parent=11 // pred_check
        %p248 = pneg %p125
      $region26: #{tpu_custom_call.1} parent=11 // pred_check_branch
        %250 = sbr.rel (%p248) target = $region28
      $region27: #{tpu_custom_call.1} parent=11 // pred_region
        _
      $region28: #{tpu_custom_call.1} parent=11 // pred_fallthru
        _
      // Predicated region
      $region29: #{tpu_custom_call.1} parent=11 // pred_check
        %p251 = pneg %p146
      $region30: #{tpu_custom_call.1} parent=11 // pred_check_branch
        %253 = sbr.rel (%p251) target = $region32
      $region31: #{tpu_custom_call.1} parent=11 // pred_region
        _
      $region32: #{tpu_custom_call.1} parent=11 // pred_fallthru
        _
    $region12: #{tpu_custom_call.1} parent=5 // pred_fallthru
      _
    %p254 = scmp.lt.s32.totalorder %s15, 2
    // Predicated region
    $region33: #{tpu_custom_call.1} parent=5 // pred_check
      %p255 = pneg %p254
    $region34: #{tpu_custom_call.1} parent=5 // pred_check_branch
      %257 = sbr.rel (%p255) target = $region36
    $region35: #{tpu_custom_call.1} parent=5 // pred_region
      // Predicated region
      $region37: #{tpu_custom_call.1} parent=35 // pred_check
        %p258 = pneg %p35
      $region38: #{tpu_custom_call.1} parent=35 // pred_check_branch
        %260 = sbr.rel (%p258) target = $region40
      $region39: #{tpu_custom_call.1} parent=35 // pred_region
        %s261 = smul.u32 4, %s15
        %p262 = scmp.lt.s32.totalorder %s261, 7
        %s263 = scalar_select %p262, %s261, 7
        %s264 = smul.addr %s263, 4
        %s265 = scalar_lea.vmem %s0, %s264
        %s266 = smul.u32 4, %s15
      $region40: #{tpu_custom_call.1} parent=35 // pred_fallthru
        _
    $region36: #{tpu_custom_call.1} parent=5 // pred_fallthru
      _
    %p267 = scmp.le.s32.totalorder 1, %s15
    %p268 = scmp.lt.s32.totalorder %s15, 3
    %p269 = pnand %p267, %p268
    %p270 = pneg %p269
    // Predicated region
    $region41: #{tpu_custom_call.1} parent=5 // pred_check
      _
    $region42: #{tpu_custom_call.1} parent=5 // pred_check_branch
      %272 = sbr.rel (%p269) target = $region44
    $region43: #{tpu_custom_call.1} parent=5 // pred_region
      %s273 = ssub.s32 %s15, 1
      %s274 = smul.u32 4, %s20
      %p275 = scmp.lt.s32.totalorder %s274, 7
      %s276 = scalar_select %p275, %s274, 7
      %s277 = smul.addr %s276, 4
      %s278 = scalar_lea.vmem %s0, %s277
      %p279 = pneg %p41
      %p280 = pneg %p38
      %p281 = pneg %p62
      %p282 = pneg %p59
      %p283 = pneg %p83
      %p284 = pneg %p80
      %p285 = pneg %p104
      %p286 = pneg %p101
      %p287 = pneg %p125
      %p288 = pneg %p122
      %p289 = pneg %p146
      %p290 = pneg %p143
      %p291 = pneg %p172
      %p292 = pneg %p169
      %s293 = smul.u32 4, %s20
      %p294 = scmp.lt.s32.totalorder %s293, 7
      %s295 = scalar_select %p294, %s293, 7
      %s296 = smul.addr %s295, 4
      %s297 = scalar_lea.vmem %s6, %s296
      %p298 = pneg %p198
      %p299 = pneg %p195
      %s300 = smul.u32 4, %s20
      %p301 = scmp.lt.s32.totalorder %s300, 7
      %s302 = scalar_select %p301, %s300, 7
      %s303 = smul.addr %s302, 4
      %s304 = scalar_lea.vmem %s7, %s303
      %p305 = pneg %p224
      %p306 = pneg %p221
      %s307 = smul.u32 4, %s20
      %p308 = scmp.lt.s32.totalorder %s307, 7
      %s309 = scalar_select %p308, %s307, 7
      %s310 = smul.addr %s309, 4
      %s311 = scalar_lea.vmem %s8, %s310
      %s312 = smul.u32 4, %s20
      %p313 = scmp.lt.s32.totalorder %s312, 7
      %s314 = scalar_select %p313, %s312, 7
      %s315 = smul.addr %s314, 4
      %s316 = scalar_lea.vmem %s0, %s315
      %s317 = smul.u32 4, %s20
      %s318 = smul.u32 4, %s20
      %p319 = scmp.lt.s32.totalorder %s318, 7
      %s320 = scalar_select %p319, %s318, 7
      %s321 = smul.addr %s320, 4
      %s322 = scalar_lea.vmem %s6, %s321
      %s323 = smul.u32 4, %s20
      %s324 = smul.u32 4, %s20
      %p325 = scmp.lt.s32.totalorder %s324, 7
      %s326 = scalar_select %p325, %s324, 7
      %s327 = smul.addr %s326, 4
      %s328 = scalar_lea.vmem %s7, %s327
      %s329 = smul.u32 4, %s20
      %s330 = smul.u32 4, %s20
      %p331 = scmp.lt.s32.totalorder %s330, 7
      %s332 = scalar_select %p331, %s330, 7
      %s333 = smul.addr %s332, 4
      %s334 = scalar_lea.vmem %s8, %s333
      %s335 = smul.u32 4, %s20
      %v337 = vld [vmem:[%s316] sm:$0xf]
      %v338 = vld [vmem:[%s316 + $0x4] sm:$0xf]
      %v339 = vld [vmem:[%s316 + $0x8] sm:$0xf]
      %v340 = vld [vmem:[%s316 + $0xc] sm:$0xf]
      %v341 = vld [vmem:[%s1] sm:$0xf]
      %v342 = vld [vmem:[%s1 + $0x4] sm:$0xf]
      %v343 = vld [vmem:[%s1 + $0x8] sm:$0xf]
      %v344 = vld [vmem:[%s1 + $0xc] sm:$0xf]
      %v345 = vld [vmem:[%s1 + $0x10] sm:$0xf]
      %v346 = vld [vmem:[%s1 + $0x14] sm:$0xf]
      %v347 = vld [vmem:[%s1 + $0x18] sm:$0xf]
      %v348 = vld [vmem:[%s1 + $0x1c] sm:$0xf]
      %v349 = vld [vmem:[%s1 + $0x20] sm:$0xf]
      %v350 = vld [vmem:[%s1 + $0x24] sm:$0xf]
      %v351 = vld [vmem:[%s1 + $0x28] sm:$0xf]
      %v352 = vld [vmem:[%s1 + $0x2c] sm:$0xf]
      %v353 = vld [vmem:[%s1 + $0x30] sm:$0xf]
      %v354 = vld [vmem:[%s1 + $0x34] sm:$0xf]
      %v355 = vld [vmem:[%s1 + $0x38] sm:$0xf]
      %v356 = vld [vmem:[%s1 + $0x3c] sm:$0xf]
      %v361 = vunpack.c.l.b16 %v337
      %v362 = vunpack.c.l.b16 %v338
      %v363 = vunpack.c.l.b16 %v339
      %v364 = vunpack.c.l.b16 %v340
      %v365 = vpack.c.b16 %v362, %v361
      %v366 = vpack.c.b16 %v364, %v363
      %v385 = vunpack.c.l.b16 %v341
      %v386 = vunpack.c.l.b16 %v342
      %v387 = vunpack.c.l.b16 %v343
      %v388 = vunpack.c.l.b16 %v344
      %v389 = vunpack.c.l.b16 %v345
      %v390 = vunpack.c.l.b16 %v346
      %v391 = vunpack.c.l.b16 %v347
      %v392 = vunpack.c.l.b16 %v348
      %v393 = vunpack.c.l.b16 %v349
      %v394 = vunpack.c.l.b16 %v350
      %v395 = vunpack.c.l.b16 %v351
      %v396 = vunpack.c.l.b16 %v352
      %v397 = vunpack.c.l.b16 %v353
      %v398 = vunpack.c.l.b16 %v354
      %v399 = vunpack.c.l.b16 %v355
      %v400 = vunpack.c.l.b16 %v356
      %v401 = vpack.c.b16 %v386, %v385
      %v402 = vpack.c.b16 %v388, %v387
      %v403 = vpack.c.b16 %v390, %v389
      %v404 = vpack.c.b16 %v392, %v391
      %v405 = vpack.c.b16 %v394, %v393
      %v406 = vpack.c.b16 %v396, %v395
      %v407 = vpack.c.b16 %v398, %v397
      %v408 = vpack.c.b16 %v400, %v399
      %417 = vmatprep.subr.bf16.mxu0 0
      %418 = vmatpush1.bf16.msra.mxu0 %v401
      %419 = vmatprep.subr.bf16.mxu0 0
      %420 = vmatpush1.bf16.msra.mxu0 %v402
      %421 = vmatprep.subr.bf16.mxu0 0
      %422 = vmatpush1.bf16.msra.mxu0 %v403
      %423 = vmatprep.subr.bf16.mxu0 0
      %424 = vmatpush1.bf16.msra.mxu0 %v404
      %425 = vmatprep.subr.bf16.mxu0 0
      %426 = vmatpush1.bf16.msra.mxu0 %v405
      %427 = vmatprep.subr.bf16.mxu0 0
      %428 = vmatpush1.bf16.msra.mxu0 %v406
      %429 = vmatprep.subr.bf16.mxu0 0
      %430 = vmatpush1.bf16.msra.mxu0 %v407
      %431 = vmatprep.subr.bf16.mxu0 0
      %432 = vmatpush1.bf16.msra.mxu0 %v408
      %433 = vmatprep.subr.bf16.mxu0 0
      %434 = vmatpush1.bf16.msra.mxu0 0
      %435 = vmatprep.subr.bf16.mxu0 0
      %436 = vmatpush1.bf16.msra.mxu0 0
      %437 = vmatprep.subr.bf16.mxu0 0
      %438 = vmatpush1.bf16.msra.mxu0 0
      %439 = vmatprep.subr.bf16.mxu0 0
      %440 = vmatpush1.bf16.msra.mxu0 0
      %441 = vmatprep.subr.bf16.mxu0 0
      %442 = vmatpush1.bf16.msra.mxu0 0
      %443 = vmatprep.subr.bf16.mxu0 0
      %444 = vmatpush1.bf16.msra.mxu0 0
      %445 = vmatprep.subr.bf16.mxu0 0
      %446 = vmatpush1.bf16.msra.mxu0 0
      %447 = vmatprep.subr.bf16.mxu0 0
      %448 = vmatpush1.bf16.msra.mxu0 0
      %449 = vmatprep.mubr.bf16.mxu0 0
      %450 = vmatmul.mubr.bf16.gmra.mrb[0].mxu0 %v365
      %v451 = vpop.f32.mrb[0].mxu0
      %v452 = vadd.f32 0.0, %v451
      %v453 = vpop.f32.mrb[0].mxu0
      %v454 = vpop.f32.mrb[0].mxu0
      %v455 = vadd.f32 0.0, %v454
      %v456 = vpop.f32.mrb[0].mxu0
      %457 = vmatprep.mubr.bf16.mxu0 0
      %458 = vmatmul.mubr.bf16.gmra.mrb[0].mxu0 %v366
      %v459 = vpop.f32.mrb[0].mxu0
      %v460 = vadd.f32 0.0, %v459
      %v461 = vpop.f32.mrb[0].mxu0
      %v462 = vpop.f32.mrb[0].mxu0
      %v463 = vadd.f32 0.0, %v462
      %v464 = vpop.f32.mrb[0].mxu0
      %465 = vdwg.mxu0
      %v466 = vpack.c.bf16 %v455, %v452
      %v467 = vpack.c.bf16 %v463, %v460
      %v470 = vunpack.c.l.b16 %v466
      %v471 = vunpack.c.h.b16 %v466
      %v472 = vunpack.c.l.b16 %v467
      %v473 = vunpack.c.h.b16 %v467
      %v474 = vpack.c.b16 %v470, %v470
      %v475 = vpack.c.b16 %v471, %v471
      %v476 = vpack.c.b16 %v472, %v472
      %v477 = vpack.c.b16 %v473, %v473
      %vm482 = vcmask 125952
      %483 = vst.msk [vmem:[%s322] sm:$0xf] %vm482, %v474
      %484 = vst.msk [vmem:[%s322 + $0x4] sm:$0xf] %vm482, %v475
      %485 = vst.msk [vmem:[%s322 + $0x8] sm:$0xf] %vm482, %v476
      %486 = vst.msk [vmem:[%s322 + $0xc] sm:$0xf] %vm482, %v477
      %v487 = vld [vmem:[%s2] sm:$0xf]
      %v488 = vld [vmem:[%s2 + $0x4] sm:$0xf]
      %v489 = vld [vmem:[%s2 + $0x8] sm:$0xf]
      %v490 = vld [vmem:[%s2 + $0xc] sm:$0xf]
      %v491 = vld [vmem:[%s2 + $0x10] sm:$0xf]
      %v492 = vld [vmem:[%s2 + $0x14] sm:$0xf]
      %v493 = vld [vmem:[%s2 + $0x18] sm:$0xf]
      %v494 = vld [vmem:[%s2 + $0x1c] sm:$0xf]
      %v495 = vld [vmem:[%s2 + $0x20] sm:$0xf]
      %v496 = vld [vmem:[%s2 + $0x24] sm:$0xf]
      %v497 = vld [vmem:[%s2 + $0x28] sm:$0xf]
      %v498 = vld [vmem:[%s2 + $0x2c] sm:$0xf]
      %v499 = vld [vmem:[%s2 + $0x30] sm:$0xf]
      %v500 = vld [vmem:[%s2 + $0x34] sm:$0xf]
      %v501 = vld [vmem:[%s2 + $0x38] sm:$0xf]
      %v502 = vld [vmem:[%s2 + $0x3c] sm:$0xf]
      %v519 = vunpack.c.l.b16 %v487
      %v520 = vunpack.c.l.b16 %v488
      %v521 = vunpack.c.l.b16 %v489
      %v522 = vunpack.c.l.b16 %v490
      %v523 = vunpack.c.l.b16 %v491
      %v524 = vunpack.c.l.b16 %v492
      %v525 = vunpack.c.l.b16 %v493
      %v526 = vunpack.c.l.b16 %v494
      %v527 = vunpack.c.l.b16 %v495
      %v528 = vunpack.c.l.b16 %v496
      %v529 = vunpack.c.l.b16 %v497
      %v530 = vunpack.c.l.b16 %v498
      %v531 = vunpack.c.l.b16 %v499
      %v532 = vunpack.c.l.b16 %v500
      %v533 = vunpack.c.l.b16 %v501
      %v534 = vunpack.c.l.b16 %v502
      %v535 = vpack.c.b16 %v520, %v519
      %v536 = vpack.c.b16 %v522, %v521
      %v537 = vpack.c.b16 %v524, %v523
      %v538 = vpack.c.b16 %v526, %v525
      %v539 = vpack.c.b16 %v528, %v527
      %v540 = vpack.c.b16 %v530, %v529
      %v541 = vpack.c.b16 %v532, %v531
      %v542 = vpack.c.b16 %v534, %v533
      %551 = vmatprep.subr.bf16.mxu0 0
      %552 = vmatpush1.bf16.msra.mxu0 %v535
      %553 = vmatprep.subr.bf16.mxu0 0
      %554 = vmatpush1.bf16.msra.mxu0 %v536
      %555 = vmatprep.subr.bf16.mxu0 0
      %556 = vmatpush1.bf16.msra.mxu0 %v537
      %557 = vmatprep.subr.bf16.mxu0 0
      %558 = vmatpush1.bf16.msra.mxu0 %v538
      %559 = vmatprep.subr.bf16.mxu0 0
      %560 = vmatpush1.bf16.msra.mxu0 %v539
      %561 = vmatprep.subr.bf16.mxu0 0
      %562 = vmatpush1.bf16.msra.mxu0 %v540
      %563 = vmatprep.subr.bf16.mxu0 0
      %564 = vmatpush1.bf16.msra.mxu0 %v541
      %565 = vmatprep.subr.bf16.mxu0 0
      %566 = vmatpush1.bf16.msra.mxu0 %v542
      %567 = vmatprep.subr.bf16.mxu0 0
      %568 = vmatpush1.bf16.msra.mxu0 0
      %569 = vmatprep.subr.bf16.mxu0 0
      %570 = vmatpush1.bf16.msra.mxu0 0
      %571 = vmatprep.subr.bf16.mxu0 0
      %572 = vmatpush1.bf16.msra.mxu0 0
      %573 = vmatprep.subr.bf16.mxu0 0
      %574 = vmatpush1.bf16.msra.mxu0 0
      %575 = vmatprep.subr.bf16.mxu0 0
      %576 = vmatpush1.bf16.msra.mxu0 0
      %577 = vmatprep.subr.bf16.mxu0 0
      %578 = vmatpush1.bf16.msra.mxu0 0
      %579 = vmatprep.subr.bf16.mxu0 0
      %580 = vmatpush1.bf16.msra.mxu0 0
      %581 = vmatprep.subr.bf16.mxu0 0
      %582 = vmatpush1.bf16.msra.mxu0 0
      %583 = vmatprep.mubr.bf16.mxu0 0
      %584 = vmatmul.mubr.bf16.gmra.mrb[0].mxu0 %v365
      %v585 = vpop.f32.mrb[0].mxu0
      %v586 = vadd.f32 0.0, %v585
      %v587 = vpop.f32.mrb[0].mxu0
      %v588 = vpop.f32.mrb[0].mxu0
      %v589 = vadd.f32 0.0, %v588
      %v590 = vpop.f32.mrb[0].mxu0
      %591 = vmatprep.mubr.bf16.mxu0 0
      %592 = vmatmul.mubr.bf16.gmra.mrb[0].mxu0 %v366
      %v593 = vpop.f32.mrb[0].mxu0
      %v594 = vadd.f32 0.0, %v593
      %v595 = vpop.f32.mrb[0].mxu0
      %v596 = vpop.f32.mrb[0].mxu0
      %v597 = vadd.f32 0.0, %v596
      %v598 = vpop.f32.mrb[0].mxu0
      %599 = vdwg.mxu0
      %v600 = vpack.c.bf16 %v589, %v586
      %v601 = vpack.c.bf16 %v597, %v594
      %v604 = vunpack.c.l.b16 %v600
      %v605 = vunpack.c.h.b16 %v600
      %v606 = vunpack.c.l.b16 %v601
      %v607 = vunpack.c.h.b16 %v601
      %v608 = vpack.c.b16 %v604, %v604
      %v609 = vpack.c.b16 %v605, %v605
      %v610 = vpack.c.b16 %v606, %v606
      %v611 = vpack.c.b16 %v607, %v607
      %616 = vst.msk [vmem:[%s328] sm:$0xf] %vm482, %v608
      %617 = vst.msk [vmem:[%s328 + $0x4] sm:$0xf] %vm482, %v609
      %618 = vst.msk [vmem:[%s328 + $0x8] sm:$0xf] %vm482, %v610
      %619 = vst.msk [vmem:[%s328 + $0xc] sm:$0xf] %vm482, %v611
      %v620 = vld [vmem:[%s3] sm:$0xf]
      %v621 = vld [vmem:[%s3 + $0x4] sm:$0xf]
      %v622 = vld [vmem:[%s3 + $0x8] sm:$0xf]
      %v623 = vld [vmem:[%s3 + $0xc] sm:$0xf]
      %v624 = vld [vmem:[%s3 + $0x10] sm:$0xf]
      %v625 = vld [vmem:[%s3 + $0x14] sm:$0xf]
      %v626 = vld [vmem:[%s3 + $0x18] sm:$0xf]
      %v627 = vld [vmem:[%s3 + $0x1c] sm:$0xf]
      %v628 = vld [vmem:[%s3 + $0x20] sm:$0xf]
      %v629 = vld [vmem:[%s3 + $0x24] sm:$0xf]
      %v630 = vld [vmem:[%s3 + $0x28] sm:$0xf]
      %v631 = vld [vmem:[%s3 + $0x2c] sm:$0xf]
      %v632 = vld [vmem:[%s3 + $0x30] sm:$0xf]
      %v633 = vld [vmem:[%s3 + $0x34] sm:$0xf]
      %v634 = vld [vmem:[%s3 + $0x38] sm:$0xf]
      %v635 = vld [vmem:[%s3 + $0x3c] sm:$0xf]
      %v652 = vunpack.c.l.b16 %v620
      %v653 = vunpack.c.l.b16 %v621
      %v654 = vunpack.c.l.b16 %v622
      %v655 = vunpack.c.l.b16 %v623
      %v656 = vunpack.c.l.b16 %v624
      %v657 = vunpack.c.l.b16 %v625
      %v658 = vunpack.c.l.b16 %v626
      %v659 = vunpack.c.l.b16 %v627
      %v660 = vunpack.c.l.b16 %v628
      %v661 = vunpack.c.l.b16 %v629
      %v662 = vunpack.c.l.b16 %v630
      %v663 = vunpack.c.l.b16 %v631
      %v664 = vunpack.c.l.b16 %v632
      %v665 = vunpack.c.l.b16 %v633
      %v666 = vunpack.c.l.b16 %v634
      %v667 = vunpack.c.l.b16 %v635
      %v668 = vpack.c.b16 %v653, %v652
      %v669 = vpack.c.b16 %v655, %v654
      %v670 = vpack.c.b16 %v657, %v656
      %v671 = vpack.c.b16 %v659, %v658
      %v672 = vpack.c.b16 %v661, %v660
      %v673 = vpack.c.b16 %v663, %v662
      %v674 = vpack.c.b16 %v665, %v664
      %v675 = vpack.c.b16 %v667, %v666
      %684 = vmatprep.subr.bf16.mxu0 0
      %685 = vmatpush1.bf16.msra.mxu0 %v668
      %686 = vmatprep.subr.bf16.mxu0 0
      %687 = vmatpush1.bf16.msra.mxu0 %v669
      %688 = vmatprep.subr.bf16.mxu0 0
      %689 = vmatpush1.bf16.msra.mxu0 %v670
      %690 = vmatprep.subr.bf16.mxu0 0
      %691 = vmatpush1.bf16.msra.mxu0 %v671
      %692 = vmatprep.subr.bf16.mxu0 0
      %693 = vmatpush1.bf16.msra.mxu0 %v672
      %694 = vmatprep.subr.bf16.mxu0 0
      %695 = vmatpush1.bf16.msra.mxu0 %v673
      %696 = vmatprep.subr.bf16.mxu0 0
      %697 = vmatpush1.bf16.msra.mxu0 %v674
      %698 = vmatprep.subr.bf16.mxu0 0
      %699 = vmatpush1.bf16.msra.mxu0 %v675
      %700 = vmatprep.subr.bf16.mxu0 0
      %701 = vmatpush1.bf16.msra.mxu0 0
      %702 = vmatprep.subr.bf16.mxu0 0
      %703 = vmatpush1.bf16.msra.mxu0 0
      %704 = vmatprep.subr.bf16.mxu0 0
      %705 = vmatpush1.bf16.msra.mxu0 0
      %706 = vmatprep.subr.bf16.mxu0 0
      %707 = vmatpush1.bf16.msra.mxu0 0
      %708 = vmatprep.subr.bf16.mxu0 0
      %709 = vmatpush1.bf16.msra.mxu0 0
      %710 = vmatprep.subr.bf16.mxu0 0
      %711 = vmatpush1.bf16.msra.mxu0 0
      %712 = vmatprep.subr.bf16.mxu0 0
      %713 = vmatpush1.bf16.msra.mxu0 0
      %714 = vmatprep.subr.bf16.mxu0 0
      %715 = vmatpush1.bf16.msra.mxu0 0
      %716 = vmatprep.mubr.bf16.mxu0 0
      %717 = vmatmul.mubr.bf16.gmra.mrb[0].mxu0 %v365
      %v718 = vpop.f32.mrb[0].mxu0
      %v719 = vadd.f32 0.0, %v718
      %v720 = vpop.f32.mrb[0].mxu0
      %v721 = vpop.f32.mrb[0].mxu0
      %v722 = vadd.f32 0.0, %v721
      %v723 = vpop.f32.mrb[0].mxu0
      %724 = vmatprep.mubr.bf16.mxu0 0
      %725 = vmatmul.mubr.bf16.gmra.mrb[0].mxu0 %v366
      %v726 = vpop.f32.mrb[0].mxu0
      %v727 = vadd.f32 0.0, %v726
      %v728 = vpop.f32.mrb[0].mxu0
      %v729 = vpop.f32.mrb[0].mxu0
      %v730 = vadd.f32 0.0, %v729
      %v731 = vpop.f32.mrb[0].mxu0
      %732 = vdwg.mxu0
      %v733 = vpack.c.bf16 %v722, %v719
      %v734 = vpack.c.bf16 %v730, %v727
      %v737 = vunpack.c.l.b16 %v733
      %v738 = vunpack.c.h.b16 %v733
      %v739 = vunpack.c.l.b16 %v734
      %v740 = vunpack.c.h.b16 %v734
      %v741 = vpack.c.b16 %v737, %v737
      %v742 = vpack.c.b16 %v738, %v738
      %v743 = vpack.c.b16 %v739, %v739
      %v744 = vpack.c.b16 %v740, %v740
      %749 = vst.msk [vmem:[%s334] sm:$0xf] %vm482, %v741
      %750 = vst.msk [vmem:[%s334 + $0x4] sm:$0xf] %vm482, %v742
      %751 = vst.msk [vmem:[%s334 + $0x8] sm:$0xf] %vm482, %v743
      %752 = vst.msk [vmem:[%s334 + $0xc] sm:$0xf] %vm482, %v744
      %s753 = smul.u32 4, %s20
      %p754 = scmp.lt.s32.totalorder %s753, 7
      %s755 = scalar_select %p754, %s753, 7
      %s756 = smul.addr %s755, 4
      %s757 = scalar_lea.vmem %s6, %s756
      %s758 = smul.u32 4, %s20
      %p759 = scmp.lt.s32.totalorder %s758, 7
      %s760 = scalar_select %p759, %s758, 7
      %s761 = smul.addr %s760, 4
      %s762 = scalar_lea.vmem %s7, %s761
      %s763 = smul.u32 4, %s20
      %p764 = scmp.lt.s32.totalorder %s763, 7
      %s765 = scalar_select %p764, %s763, 7
      %s766 = smul.addr %s765, 4
      %s767 = scalar_lea.vmem %s8, %s766
      // Predicated region
      $region45: #{tpu_custom_call.1} parent=43 // pred_check
        %p768 = pneg %p169
      $region46: #{tpu_custom_call.1} parent=43 // pred_check_branch
        %770 = sbr.rel (%p768) target = $region48
      $region47: #{tpu_custom_call.1} parent=43 // pred_region
        %s771 = smul.u32 4, %s20
      $region48: #{tpu_custom_call.1} parent=43 // pred_fallthru
        _
      // Predicated region
      $region49: #{tpu_custom_call.1} parent=43 // pred_check
        %p772 = pneg %p195
      $region50: #{tpu_custom_call.1} parent=43 // pred_check_branch
        %774 = sbr.rel (%p772) target = $region52
      $region51: #{tpu_custom_call.1} parent=43 // pred_region
        %s775 = smul.u32 4, %s20
      $region52: #{tpu_custom_call.1} parent=43 // pred_fallthru
        _
      // Predicated region
      $region53: #{tpu_custom_call.1} parent=43 // pred_check
        %p776 = pneg %p221
      $region54: #{tpu_custom_call.1} parent=43 // pred_check_branch
        %778 = sbr.rel (%p776) target = $region56
      $region55: #{tpu_custom_call.1} parent=43 // pred_region
        %s779 = smul.u32 4, %s20
      $region56: #{tpu_custom_call.1} parent=43 // pred_fallthru
        _
    $region44: #{tpu_custom_call.1} parent=5 // pred_fallthru
      _
    %p780 = scmp.le.s32.totalorder 2, %s15
    // Predicated region
    $region57: #{tpu_custom_call.1} parent=5 // pred_check
      %p781 = pneg %p780
    $region58: #{tpu_custom_call.1} parent=5 // pred_check_branch
      %783 = sbr.rel (%p781) target = $region60
    $region59: #{tpu_custom_call.1} parent=5 // pred_region
      %s784 = ssub.s32 %s15, 2
      // Predicated region
      $region61: #{tpu_custom_call.1} parent=59 // pred_check
        %p785 = pneg %p175
      $region62: #{tpu_custom_call.1} parent=59 // pred_check_branch
        %787 = sbr.rel (%p785) target = $region64
      $region63: #{tpu_custom_call.1} parent=59 // pred_region
        %s788 = smul.u32 4, %s21
        %p789 = scmp.lt.s32.totalorder %s788, 7
        %s790 = scalar_select %p789, %s788, 7
        %s791 = smul.addr %s790, 4
        %s792 = scalar_lea.vmem %s6, %s791
      $region64: #{tpu_custom_call.1} parent=59 // pred_fallthru
        _
      // Predicated region
      $region65: #{tpu_custom_call.1} parent=59 // pred_check
        %p793 = pneg %p201
      $region66: #{tpu_custom_call.1} parent=59 // pred_check_branch
        %795 = sbr.rel (%p793) target = $region68
      $region67: #{tpu_custom_call.1} parent=59 // pred_region
        %s796 = smul.u32 4, %s21
        %p797 = scmp.lt.s32.totalorder %s796, 7
        %s798 = scalar_select %p797, %s796, 7
        %s799 = smul.addr %s798, 4
        %s800 = scalar_lea.vmem %s7, %s799
      $region68: #{tpu_custom_call.1} parent=59 // pred_fallthru
        _
      // Predicated region
      $region69: #{tpu_custom_call.1} parent=59 // pred_check
        %p801 = pneg %p227
      $region70: #{tpu_custom_call.1} parent=59 // pred_check_branch
        %803 = sbr.rel (%p801) target = $region72
      $region71: #{tpu_custom_call.1} parent=59 // pred_region
        %s804 = smul.u32 4, %s21
        %p805 = scmp.lt.s32.totalorder %s804, 7
        %s806 = scalar_select %p805, %s804, 7
        %s807 = smul.addr %s806, 4
        %s808 = scalar_lea.vmem %s8, %s807
      $region72: #{tpu_custom_call.1} parent=59 // pred_fallthru
        _
    $region60: #{tpu_custom_call.1} parent=5 // pred_fallthru
      _
  $region6: #{tpu_custom_call.1} parent=0 // loop_footer
    %s19 = sadd.s32 1, %s15
  $region7: #{tpu_custom_call.1} parent=0 // loop_footer_branch
    %14 = sbr.rel target = $region3
  $region8: #{tpu_custom_call.1} parent=0 // loop_exit
    _

</llo_original>
